<compile_context>
chip_gen: v7x
topology: tpu7x:2x2x1
jax: 0.10.0
libtpu: 0.0.40
codegen_flags: <defaults>
</compile_context>

<pallas_src>
import math

import jax
import jax.numpy as jnp
from jax.experimental import pallas as pl
from jax.experimental.pallas import tpu as pltpu

_MIB = 1024 * 1024


def _round_up(x, m):
    return ((x + m - 1) // m) * m


def _sublane_mult(itemsize):
    # f32 -> 8, bf16 -> 16, int8/fp8 -> 32 (sublane tile of the dtype).
    return max(8, 32 // max(1, itemsize))


def _chip_block_target():
    """Generation-aware per-input block byte target + VMEM capacity."""
    vmem_cap = 128 * _MIB
    try:
        info = pltpu.get_tpu_info()
        cap = int(getattr(info, "vmem_capacity_bytes", 0) or 0)
        if cap > 0:
            vmem_cap = cap
    except Exception:
        pass
    # v7x-class chips (64 MiB VMEM / TC, ~3.2 TB/s HBM) need the biggest blocks
    # to amortize the ~0.35 us/step overhead; ~2 MiB already sits near the HBM
    # roofline on v5e/v6e.
    target = 3 * _MIB if vmem_cap <= 64 * _MIB else 2 * _MIB
    return target, vmem_cap


def _row_tile(n_rows, n_cols, itemsize, target_bytes, row_tile=None):
    """Pick a legal, VMEM-friendly row tile for an (n_rows, n_cols) matrix."""
    mult = _sublane_mult(itemsize)
    if row_tile is not None:
        rt = max(mult, (int(row_tile) // mult) * mult)
    else:
        lane_bytes = _round_up(n_cols, 128) * itemsize  # VMEM bytes per row
        rt = max(mult, (int(target_bytes) // max(1, lane_bytes)) // mult * mult)
    if n_rows <= rt:
        return n_rows  # a full-extent block is always a legal block shape
    return rt


def _build_kernel(meta, total_steps, power):
    n_emb = len(meta)

    def _row_hinge(x, dim, k):
        xf = x.astype(jnp.float32)
        if power == 2:
            xp = xf * xf
        elif power == 1:
            xp = xf
        else:
            xp = xf ** power
        if k > 1:
            # Packed layout: each VMEM row holds k original rows of `dim`
            # contiguous lanes.  Recover the k per-sub-row sums with a tiny
            # block-diagonal ones matmul on the (otherwise idle) MXU.  The
            # hi/lo split keeps the reduce f32-accurate even if the chip's
            # default f32 matmul uses a single bf16 pass.
            cols = k * dim
            seg = jax.lax.broadcasted_iota(jnp.int32, (cols, k), 0) // dim
            col = jax.lax.broadcasted_iota(jnp.int32, (cols, k), 1)
            ones_bd = (seg == col).astype(jnp.float32)
            xp_hi = xp.astype(jnp.bfloat16).astype(jnp.float32)
            xp_lo = xp - xp_hi
            row = (jnp.dot(xp_hi, ones_bd, preferred_element_type=jnp.float32)
                   + jnp.dot(xp_lo, ones_bd, preferred_element_type=jnp.float32))
        else:
            row = jnp.sum(xp, axis=-1, keepdims=True)  # (tile, 1) per-row sum
        return jnp.maximum(row - 1.0, 0.0)

    def kernel(*refs):
        x_refs = refs[:n_emb]
        o_ref = refs[n_emb]  # (1, 1) resident accumulator (constant index map)
        i = pl.program_id(0)

        @pl.when(i == 0)
        def _init():
            o_ref[...] = jnp.zeros_like(o_ref)

        for j, m in enumerate(meta):
            dim, k, full, tail = m["dim"], m["k"], m["full"], m["tail"]

            def _acc_full(j=j, dim=dim, k=k):
                o_ref[...] += jnp.sum(_row_hinge(x_refs[j][...], dim, k))

            def _acc_tail(j=j, dim=dim, k=k, tail=tail):
                h = _row_hinge(x_refs[j][...], dim, k)
                # Rows past the valid range hold unspecified data (possibly
                # inf/NaN after **power); mask the per-row hinge to 0.
                r = jax.lax.broadcasted_iota(jnp.int32, h.shape, 0)
                o_ref[...] += jnp.sum(jnp.where(r < tail, h, 0.0))

            if full == total_steps:            # every grid step is a full tile
                _acc_full()
            else:
                if full > 0:
                    pl.when(i < full)(_acc_full)
                if tail > 0:
                    pl.when(i == full)(_acc_tail)

    return kernel


def emb_margin_loss(*embeddings, power=2, row_tile=None):
    """JAX/Pallas equivalent of recbole EmbMarginLoss.forward."""
    if not embeddings:
        return jnp.zeros((), jnp.float32)

    mats, meta = [], []
    for e in embeddings:
        e = jnp.asarray(e)
        if e.ndim < 2:
            raise ValueError("EmbMarginLoss expects embeddings of rank >= 2")
        if e.ndim > 2:
            # torch sums over dim=1: put that axis last, everything else rows.
            d = e.shape[1]
            e = jnp.moveaxis(e, 1, -1).reshape(-1, d)
        rows, dim = int(e.shape[0]), int(e.shape[1])
        if rows == 0 or dim == 0:
            continue
        itemsize = e.dtype.itemsize
        # Lane-dense packing for narrow embeddings: (B, D) -> (B//k, k*D) is a
        # free contiguous reshape (no HBM copy).
        k = 1
        if dim < 128 and 128 % dim == 0:
            k = math.gcd(128 // dim, rows)       # power of two dividing rows
            if k > 1 and (rows // k) < _sublane_mult(itemsize):
                k = 1                            # too small for packing to pay
        if k > 1:
            e = e.reshape(rows // k, k * dim)
        mats.append(e)
        meta.append(dict(rows=int(e.shape[0]), cols=int(e.shape[1]), dim=dim,
                         k=k, orig_rows=rows, itemsize=itemsize))

    if not mats:
        return jnp.zeros((), jnp.float32)

    n_emb = len(mats)
    target, vmem_cap = _chip_block_target()
    # All input blocks are double-buffered by the pipeline: keep their sum
    # inside a conservative VMEM budget.
    budget = min(40 * _MIB, int(vmem_cap * 0.55))
    per_emb_target = max(_MIB // 2, min(target, budget // (2 * n_emb)))

    total_in_vmem = 0
    for m in meta:
        tile = _row_tile(m["rows"], m["cols"], m["itemsize"], per_emb_target,
                         row_tile)
        m["tile"] = tile
        m["full"] = m["rows"] // tile
        m["tail"] = m["rows"] % tile
        m["steps"] = m["full"] + (1 if m["tail"] else 0)
        mult = _sublane_mult(m["itemsize"])
        total_in_vmem += (2 * _round_up(tile, mult)
                          * _round_up(m["cols"], 128) * m["itemsize"])

    total_steps = max(m["steps"] for m in meta)

    def make_in_spec(m):
        steps = m["steps"]
        if steps == total_steps:
            index_map = lambda i: (i, 0)
        else:
            # Clamp: embeddings with fewer tiles than the grid keep re-using
            # their last block index (no OOB, no repeat DMA on revisit);
            # pl.when in the kernel prevents double counting.
            index_map = lambda i, s=steps: (jnp.minimum(i, s - 1), 0)
        return pl.BlockSpec((m["tile"], m["cols"]), index_map)

    in_specs = [make_in_spec(m) for m in meta]
    out_spec = pl.BlockSpec((1, 1), lambda i: (0, 0))
    kernel = _build_kernel(meta, total_steps, power)

    total_elems = sum(m["orig_rows"] * m["dim"] for m in meta)
    in_bytes = sum(m["orig_rows"] * m["dim"] * m["itemsize"] for m in meta)
    cost = pl.CostEstimate(flops=2 * total_elems, transcendentals=0,
                           bytes_accessed=in_bytes + 4)
    # Scoped-VMEM defaults (16 MiB v5e / 32 MiB v6e+) would reject the larger
    # streaming blocks; ask for exactly what we need plus headroom.
    vmem_limit = int(min(max(32 * _MIB, total_in_vmem + 4 * _MIB),
                         max(32 * _MIB, vmem_cap - 8 * _MIB)))

    out = pl.pallas_call(
        kernel,
        out_shape=jax.ShapeDtypeStruct((1, 1), jnp.float32),
        grid_spec=pltpu.PrefetchScalarGridSpec(
            num_scalar_prefetch=0,
            grid=(total_steps,),
            in_specs=in_specs,
            out_specs=out_spec,
        ),
        compiler_params=pltpu.CompilerParams(
            dimension_semantics=("arbitrary",),   # streaming reduction axis
            vmem_limit_bytes=vmem_limit,
        ),
        cost_estimate=cost,
    )(*mats)
    return out[0, 0]


def _reference(*embeddings, power=2):
    total = jnp.zeros((), jnp.float32)
    for e in embeddings:
        norm_e = jnp.sum(e.astype(jnp.float32) ** power, axis=1, keepdims=True)
        total = total + jnp.sum(jnp.maximum(norm_e - 1.0, 0.0))
    return total


if __name__ == "__main__":
    key = jax.random.PRNGKey(0)
    k1, k2, k3, k4, k5, k6 = jax.random.split(key, 6)

    # Typical recbole usage: a few small (batch, embedding_size) slices,
    # handled in a single launch.
    user_emb = jax.random.normal(k1, (2, 32), dtype=jnp.float32)
    item_emb = jax.random.normal(k2, (2, 32), dtype=jnp.float32)
    neg_emb = jax.random.normal(k3, (2, 32), dtype=jnp.float32)

    out = emb_margin_loss(user_emb, item_emb, neg_emb)
    jax.block_until_ready(out)
    ref = _reference(user_emb, item_emb, neg_emb)
    assert out.shape == ()
    assert jnp.allclose(out, ref, rtol=1e-5, atol=1e-4), (out, ref)

    # Multi-tile path: lane-packed narrow-D (k=4 and k=2), an unpackable
    # ragged one, and short-grid clamped index maps, forced to small tiles.
    big_a = jax.random.normal(k4, (72, 32), dtype=jnp.float32) * 0.15  # packed k=4
    big_b = jax.random.normal(k5, (37, 24), dtype=jnp.float32) * 0.15  # unpacked
    big_c = jax.random.normal(k6, (40, 64), dtype=jnp.float32) * 0.15  # packed k=2
    out2 = emb_margin_loss(big_a, big_b, big_c, row_tile=16)
    jax.block_until_ready(out2)
    ref2 = _reference(big_a, big_b, big_c)
    assert jnp.allclose(out2, ref2, rtol=1e-4, atol=1e-3), (out2, ref2)

    print("KERNEL_OK")
</pallas_src>

<mosaic_0001>
module attributes {stable_mosaic.version = 11 : i64} {
  func.func @kernel(%arg0: i32, %arg1: memref<2x32xf32, #tpu.memory_space<vmem>>, %arg2: memref<2x32xf32, #tpu.memory_space<vmem>>, %arg3: memref<2x32xf32, #tpu.memory_space<vmem>>, %arg4: memref<1x1xf32, #tpu.memory_space<vmem>>) attributes {dimension_semantics = [#tpu.dimension_semantics<arbitrary>], iteration_bounds = array<i64: 1>, scalar_prefetch = 0 : i64, scratch_operands = 0 : i64, tpu.core_type = #tpu.core_type<tc>, window_params = [{transform_indices = @transform_0, window_bounds = array<i64: 2, 32>}, {transform_indices = @transform_1, window_bounds = array<i64: 2, 32>}, {transform_indices = @transform_2, window_bounds = array<i64: 2, 32>}, {pipeline_mode = #tpu.pipeline_mode<synchronous>, transform_indices = @transform_3, window_bounds = array<i64: 1, 1>}]} {
    %c0_i32 = arith.constant 0 : i32
    %0 = arith.cmpi eq, %arg0, %c0_i32 : i32
    %1 = arith.extui %0 : i1 to i32
    %c0_i32_0 = arith.constant 0 : i32
    %2 = arith.cmpi ne, %1, %c0_i32_0 : i32
    scf.if %2 {
      %cst_29 = arith.constant 0.000000e+00 : f32
      %51 = vector.broadcast %cst_29 : f32 to vector<1x1xf32>
      %c0_30 = arith.constant 0 : index
      %c0_31 = arith.constant 0 : index
      %52 = vector.load %arg4[%c0_30, %c0_31] : memref<1x1xf32, #tpu.memory_space<vmem>>, vector<1x1xf32>
      tpu.vector_store %arg4[%c0_30, %c0_31], %51 {strides = array<i32>} : memref<1x1xf32, #tpu.memory_space<vmem>>, vector<1x1xf32>,
    } else {
    }
    %c0 = arith.constant 0 : index
    %c0_1 = arith.constant 0 : index
    %3 = vector.load %arg4[%c0, %c0_1] : memref<1x1xf32, #tpu.memory_space<vmem>>, vector<1x1xf32>
    %c0_2 = arith.constant 0 : index
    %c0_3 = arith.constant 0 : index
    %4 = vector.load %arg1[%c0_2, %c0_3] : memref<2x32xf32, #tpu.memory_space<vmem>>, vector<2x32xf32>
    %5 = arith.mulf %4, %4 : vector<2x32xf32>
    %cst = arith.constant dense<0.000000e+00> : vector<2xf32>
    %6 = vector.multi_reduction <add>, %5, %cst [1] : vector<2x32xf32> to vector<2xf32>
    %7 = vector.shape_cast %6 : vector<2xf32> to vector<2x1xf32>
    %cst_4 = arith.constant 1.000000e+00 : f32
    %8 = vector.broadcast %cst_4 : f32 to vector<2x1xf32>
    %9 = arith.subf %7, %8 : vector<2x1xf32>
    %cst_5 = arith.constant 0.000000e+00 : f32
    %10 = vector.broadcast %cst_5 : f32 to vector<2x1xf32>
    %11 = arith.maximumf %9, %10 : vector<2x1xf32>
    %12 = vector.shape_cast %11 : vector<2x1xf32> to vector<1x2x1xf32>
    %cst_6 = arith.constant dense<0.000000e+00> : vector<1xf32>
    %13 = vector.multi_reduction <add>, %12, %cst_6 [1, 2] : vector<1x2x1xf32> to vector<1xf32>
    %14 = vector.shape_cast %13 : vector<1xf32> to vector<1x1x1xf32>
    %15 = vector.extract %14[0, 0, 0] : f32 from vector<1x1x1xf32>
    %16 = vector.broadcast %15 : f32 to vector<1x1xf32>
    %17 = arith.addf %3, %16 : vector<1x1xf32>
    %c0_7 = arith.constant 0 : index
    %c0_8 = arith.constant 0 : index
    %18 = vector.load %arg4[%c0_7, %c0_8] : memref<1x1xf32, #tpu.memory_space<vmem>>, vector<1x1xf32>
    tpu.vector_store %arg4[%c0_7, %c0_8], %17 {strides = array<i32>} : memref<1x1xf32, #tpu.memory_space<vmem>>, vector<1x1xf32>,
    %c0_9 = arith.constant 0 : index
    %c0_10 = arith.constant 0 : index
    %19 = vector.load %arg4[%c0_9, %c0_10] : memref<1x1xf32, #tpu.memory_space<vmem>>, vector<1x1xf32>
    %c0_11 = arith.constant 0 : index
    %c0_12 = arith.constant 0 : index
    %20 = vector.load %arg2[%c0_11, %c0_12] : memref<2x32xf32, #tpu.memory_space<vmem>>, vector<2x32xf32>
    %21 = arith.mulf %20, %20 : vector<2x32xf32>
    %cst_13 = arith.constant dense<0.000000e+00> : vector<2xf32>
    %22 = vector.multi_reduction <add>, %21, %cst_13 [1] : vector<2x32xf32> to vector<2xf32>
    %23 = vector.shape_cast %22 : vector<2xf32> to vector<2x1xf32>
    %cst_14 = arith.constant 1.000000e+00 : f32
    %24 = vector.broadcast %cst_14 : f32 to vector<2x1xf32>
    %25 = arith.subf %23, %24 : vector<2x1xf32>
    %cst_15 = arith.constant 0.000000e+00 : f32
    %26 = vector.broadcast %cst_15 : f32 to vector<2x1xf32>
    %27 = arith.maximumf %25, %26 : vector<2x1xf32>
    %28 = vector.shape_cast %27 : vector<2x1xf32> to vector<1x2x1xf32>
    %cst_16 = arith.constant dense<0.000000e+00> : vector<1xf32>
    %29 = vector.multi_reduction <add>, %28, %cst_16 [1, 2] : vector<1x2x1xf32> to vector<1xf32>
    %30 = vector.shape_cast %29 : vector<1xf32> to vector<1x1x1xf32>
    %31 = vector.extract %30[0, 0, 0] : f32 from vector<1x1x1xf32>
    %32 = vector.broadcast %31 : f32 to vector<1x1xf32>
    %33 = arith.addf %19, %32 : vector<1x1xf32>
    %c0_17 = arith.constant 0 : index
    %c0_18 = arith.constant 0 : index
    %34 = vector.load %arg4[%c0_17, %c0_18] : memref<1x1xf32, #tpu.memory_space<vmem>>, vector<1x1xf32>
    tpu.vector_store %arg4[%c0_17, %c0_18], %33 {strides = array<i32>} : memref<1x1xf32, #tpu.memory_space<vmem>>, vector<1x1xf32>,
    %c0_19 = arith.constant 0 : index
    %c0_20 = arith.constant 0 : index
    %35 = vector.load %arg4[%c0_19, %c0_20] : memref<1x1xf32, #tpu.memory_space<vmem>>, vector<1x1xf32>
    %c0_21 = arith.constant 0 : index
    %c0_22 = arith.constant 0 : index
    %36 = vector.load %arg3[%c0_21, %c0_22] : memref<2x32xf32, #tpu.memory_space<vmem>>, vector<2x32xf32>
    %37 = arith.mulf %36, %36 : vector<2x32xf32>
    %cst_23 = arith.constant dense<0.000000e+00> : vector<2xf32>
    %38 = vector.multi_reduction <add>, %37, %cst_23 [1] : vector<2x32xf32> to vector<2xf32>
    %39 = vector.shape_cast %38 : vector<2xf32> to vector<2x1xf32>
    %cst_24 = arith.constant 1.000000e+00 : f32
    %40 = vector.broadcast %cst_24 : f32 to vector<2x1xf32>
    %41 = arith.subf %39, %40 : vector<2x1xf32>
    %cst_25 = arith.constant 0.000000e+00 : f32
    %42 = vector.broadcast %cst_25 : f32 to vector<2x1xf32>
    %43 = arith.maximumf %41, %42 : vector<2x1xf32>
    %44 = vector.shape_cast %43 : vector<2x1xf32> to vector<1x2x1xf32>
    %cst_26 = arith.constant dense<0.000000e+00> : vector<1xf32>
    %45 = vector.multi_reduction <add>, %44, %cst_26 [1, 2] : vector<1x2x1xf32> to vector<1xf32>
    %46 = vector.shape_cast %45 : vector<1xf32> to vector<1x1x1xf32>
    %47 = vector.extract %46[0, 0, 0] : f32 from vector<1x1x1xf32>
    %48 = vector.broadcast %47 : f32 to vector<1x1xf32>
    %49 = arith.addf %35, %48 : vector<1x1xf32>
    %c0_27 = arith.constant 0 : index
    %c0_28 = arith.constant 0 : index
    %50 = vector.load %arg4[%c0_27, %c0_28] : memref<1x1xf32, #tpu.memory_space<vmem>>, vector<1x1xf32>
    tpu.vector_store %arg4[%c0_27, %c0_28], %49 {strides = array<i32>} : memref<1x1xf32, #tpu.memory_space<vmem>>, vector<1x1xf32>,
    return
  }
  func.func @transform_0(%arg0: i32) -> (i32, i32) {
    %c0_i32 = arith.constant 0 : i32
    %c0_i32_0 = arith.constant 0 : i32
    return %arg0, %c0_i32 : i32, i32
  }
  func.func @transform_1(%arg0: i32) -> (i32, i32) {
    %c0_i32 = arith.constant 0 : i32
    %c0_i32_0 = arith.constant 0 : i32
    return %arg0, %c0_i32 : i32, i32
  }
  func.func @transform_2(%arg0: i32) -> (i32, i32) {
    %c0_i32 = arith.constant 0 : i32
    %c0_i32_0 = arith.constant 0 : i32
    return %arg0, %c0_i32 : i32, i32
  }
  func.func @transform_3(%arg0: i32) -> (i32, i32) {
    %c0_i32 = arith.constant 0 : i32
    %c0_i32_0 = arith.constant 0 : i32
    %c0_i32_1 = arith.constant 0 : i32
    return %c0_i32, %c0_i32_0 : i32, i32
  }
}

</mosaic_0001>

<llo_original>
// kernel: tpu_custom_call.1
$region0: #{tpu_custom_call.1}
  #allocation0 [shape = 'u32[]', space=smem, size = 0x4, offset = 0x4, fixed_abs, tag = 'smem constant byte address 0x4 - core index']
  #allocation1 [shape = 'u32[144,128]{1,0:T(1,128)}', space=vmem, size = 0x12000, scoped, tag = 'internal scratch']
  %s0 = inlined_call_operand.hbm [shape: f32[2,32], index: 0, kind: input, shape index: {}]
  %s1 = inlined_call_operand.vmem [shape: f32[2,32], index: 1, kind: input, shape index: {}]
  %s2 = inlined_call_operand.vmem [shape: f32[2,32], index: 2, kind: input, shape index: {}]
  %s3 = inlined_call_operand.hbm [shape: f32[1,1], index: 3, kind: output, shape index: {}]
  %s4 = sld [smem:[#allocation0]]
  $region30: #{tpu_custom_call.1} parent=0
    _
  %s6 = ssub.s32 1, %s4
  %s7 = scalar_select 0, %s6, %s4
  $region1: #{tpu_custom_call.1} parent=0
    #allocation2 [shape = 'u8[1024]{0}', space=vmem, size = 0x400, scoped, tag = 'input window, operand 0, single buffered']
    #allocation3 [shape = 's32[1]{0}', space=sflag, size = 0x4, scoped, tag = 'scoped memory for tpu_custom_call.1']
    #allocation4 [shape = 's32[1]{0}', space=sflag, size = 0x4, scoped, tag = 'scoped memory for tpu_custom_call.1']
    #allocation5 [shape = 'u8[512]{0}', space=vmem, size = 0x400, scoped, tag = 'output window, operand 0, single buffered']
    %8 = vsyncpa [#allocation3], 0
    %9 = vsyncpa [#allocation4], 0
    // Predicated region
    $region2: #{tpu_custom_call.1} parent=1 // pred_check
      _
    $region3: #{tpu_custom_call.1} parent=1 // pred_check_branch
      %11 = sbr.rel (0) target = $region5
    $region4: #{tpu_custom_call.1} parent=1 // pred_region
      %s13 = ssub.s32 32, 32
      %14 = vsyncadd [#allocation3], %s13
      %s16 = sshll.u32 [#allocation2], 4
      %s17 = int_to_ptr.vmem [resolvable:$true] %s16
      %19 = dma.hbm_to_vmem [thread:$0]  %s0, 32, %s17, [#allocation3]
    $region5: #{tpu_custom_call.1} parent=1 // pred_fallthru
      _
    // Predicated region
    $region6: #{tpu_custom_call.1} parent=1 // pred_check
      _
    $region7: #{tpu_custom_call.1} parent=1 // pred_check_branch
      %21 = sbr.rel (0) target = $region9
    $region8: #{tpu_custom_call.1} parent=1 // pred_region
      _
    $region9: #{tpu_custom_call.1} parent=1 // pred_fallthru
      _
    // Predicated region
    $region10: #{tpu_custom_call.1} parent=1 // pred_check
      _
    $region11: #{tpu_custom_call.1} parent=1 // pred_check_branch
      %23 = sbr.rel (0) target = $region13
    $region12: #{tpu_custom_call.1} parent=1 // pred_region
      _
    $region13: #{tpu_custom_call.1} parent=1 // pred_fallthru
      _
    // Predicated region
    $region14: #{tpu_custom_call.1} parent=1 // pred_check
      _
    $region15: #{tpu_custom_call.1} parent=1 // pred_check_branch
      %25 = sbr.rel (0) target = $region17
    $region16: #{tpu_custom_call.1} parent=1 // pred_region
      %26 = dma.done [#allocation3], 32
    $region17: #{tpu_custom_call.1} parent=1 // pred_fallthru
      _
    %p27 = scmp.eq.s32.totalorder 0, 0
    // Predicated region
    $region18: #{tpu_custom_call.1} parent=1 // pred_check
      %p28 = pneg %p27
    $region19: #{tpu_custom_call.1} parent=1 // pred_check_branch
      %30 = sbr.rel (%p28) target = $region21
    $region20: #{tpu_custom_call.1} parent=1 // pred_region
      %vm31 = vcmask 0
      %32 = vst.msk [vmem:[#allocation5] sm:$0x1] %vm31, 0.0
    $region21: #{tpu_custom_call.1} parent=1 // pred_fallthru
      _
    %v33 = vld [vmem:[#allocation5] sm:$0x1]
    %v34 = vld [vmem:[#allocation2] sm:$0x3]
    %v35 = vmul.f32 %v34, %v34
    %vm36 = vcmask 254976
    %v37 = vsel %vm36, %v35, 0.0
    %38 = vadd.xlane.f32.xlu0 %v37
    %v39 = vpop.xlane.xlu0 %38
    %v40 = vsub.f32 %v39, 1.0
    %v41 = vmax.f32 %v40, 0.0
    %vm42 = vcmask 1024
    %v43 = vsel %vm42, %v41, 0.0
    %44 = vadd.xlane.f32.xlu0 %v43
    %v45 = vpop.xlane.xlu0 %44
    %v46 = vrot.slane %v45, 4
    %v47 = vadd.f32 %v45, %v46
    %v48 = vrot.slane %v47, 2
    %v49 = vadd.f32 %v47, %v48
    %v50 = vrot.slane %v49, 1
    %v51 = vadd.f32 %v49, %v50
    %s52 = vtos %v51
    %v53 = vstv %s52
    %v54 = vadd.f32 %v33, %v53
    %vm55 = vcmask 0
    %56 = vst.msk [vmem:[#allocation5] sm:$0x1] %vm55, %v54
    %v57 = vld [vmem:[#allocation5] sm:$0x1]
    %v58 = vld [vmem:[%s1] sm:$0x3]
    %v59 = vmul.f32 %v58, %v58
    %v60 = vsel %vm36, %v59, 0.0
    %61 = vadd.xlane.f32.xlu0 %v60
    %v62 = vpop.xlane.xlu0 %61
    %v63 = vsub.f32 %v62, 1.0
    %v64 = vmax.f32 %v63, 0.0
    %v65 = vsel %vm42, %v64, 0.0
    %66 = vadd.xlane.f32.xlu0 %v65
    %v67 = vpop.xlane.xlu0 %66
    %v68 = vrot.slane %v67, 4
    %v69 = vadd.f32 %v67, %v68
    %v70 = vrot.slane %v69, 2
    %v71 = vadd.f32 %v69, %v70
    %v72 = vrot.slane %v71, 1
    %v73 = vadd.f32 %v71, %v72
    %s74 = vtos %v73
    %v75 = vstv %s74
    %v76 = vadd.f32 %v57, %v75
    %77 = vst.msk [vmem:[#allocation5] sm:$0x1] %vm55, %v76
    %v78 = vld [vmem:[#allocation5] sm:$0x1]
    %v79 = vld [vmem:[%s2] sm:$0x3]
    %v80 = vmul.f32 %v79, %v79
    %v81 = vsel %vm36, %v80, 0.0
    %82 = vadd.xlane.f32.xlu0 %v81
    %v83 = vpop.xlane.xlu0 %82
    %v84 = vsub.f32 %v83, 1.0
    %v85 = vmax.f32 %v84, 0.0
    %v86 = vsel %vm42, %v85, 0.0
    %87 = vadd.xlane.f32.xlu0 %v86
    %v88 = vpop.xlane.xlu0 %87
    %v89 = vrot.slane %v88, 4
    %v90 = vadd.f32 %v88, %v89
    %v91 = vrot.slane %v90, 2
    %v92 = vadd.f32 %v90, %v91
    %v93 = vrot.slane %v92, 1
    %v94 = vadd.f32 %v92, %v93
    %s95 = vtos %v94
    %v96 = vstv %s95
    %v97 = vadd.f32 %v78, %v96
    %98 = vst.msk [vmem:[#allocation5] sm:$0x1] %vm55, %v97
    // Predicated region
    $region22: #{tpu_custom_call.1} parent=1 // pred_check
      _
    $region23: #{tpu_custom_call.1} parent=1 // pred_check_branch
      %100 = sbr.rel (0) target = $region25
    $region24: #{tpu_custom_call.1} parent=1 // pred_region
      %s102 = ssub.s32 16, 16
      %103 = vsyncadd [#allocation4], %s102
      %s105 = sshll.u32 [#allocation5], 4
      %s106 = int_to_ptr.vmem [resolvable:$true] %s105
      %108 = dma.vmem_to_hbm [thread:$0]  %s106, 16, %s3, [#allocation4]
    $region25: #{tpu_custom_call.1} parent=1 // pred_fallthru
      _
    // Predicated region
    $region26: #{tpu_custom_call.1} parent=1 // pred_check
      _
    $region27: #{tpu_custom_call.1} parent=1 // pred_check_branch
      %110 = sbr.rel (0) target = $region29
    $region28: #{tpu_custom_call.1} parent=1 // pred_region
      %111 = dma.done [#allocation4], 16
    $region29: #{tpu_custom_call.1} parent=1 // pred_fallthru
      _
    %112 = vsyncpa [#allocation3], 1
    %113 = vsyncpa [#allocation4], 1

</llo_original>
